<compile_context>
chip_gen: v7x
topology: tpu7x:2x2x1
jax: 0.10.0
libtpu: 0.0.40
codegen_flags: <defaults>
</compile_context>

<pallas_src>
import functools

import jax
import jax.numpy as jnp
from jax.experimental import pallas as pl
from jax.experimental.pallas import tpu as pltpu


def _round_up(x: int, m: int) -> int:
    return ((x + m - 1) // m) * m


def _vmem_capacity_bytes() -> int:
    try:
        cap = int(pltpu.get_tpu_info().vmem_capacity_bytes)
        if cap > 0:
            return cap
    except Exception:
        pass
    return 64 * 1024 * 1024  # conservative fallback (v7x per-TC physical VMEM)


def _choose_tile_m(m: int, cap: int = 512) -> int:
    # Aim for >=2 grid steps when there is enough work (v7x has 2 TCs and the
    # M axis is marked "parallel"), cap the tile for VMEM, and round to the
    # bf16 sublane tile (16 rows).
    half = _round_up(max(-(-m // 2), 8), 16)
    return max(16, min(cap, half))


def _param_spec(shape, single_buffer: bool) -> pl.BlockSpec:
    index_map = lambda i: (0,) * len(shape)
    if single_buffer:
        try:
            # Constant index_map -> the block never changes; one buffer suffices.
            return pl.BlockSpec(shape, index_map, pipeline_mode=pl.Buffered(1))
        except TypeError:
            pass
    return pl.BlockSpec(shape, index_map)


def _mlp_fused_kernel(*refs, num_hidden: int):
    # Refs (num_hidden > 0): x, w_hidden, b_hidden, w_last, b_last, out
    #       x        [tile_m, d_pad]            bf16
    #       w_hidden [num_hidden, d_pad, d_pad] bf16   (resident in VMEM)
    #       b_hidden [num_hidden, 1, d_pad]     f32    (resident in VMEM)
    #       w_last   [d_pad, d_out_pad]         bf16   (resident in VMEM)
    #       b_last   [1, d_out_pad]             f32    (resident in VMEM)
    #       out      [tile_m, d_out_pad]        f32    (lane-dense store)
    if num_hidden > 0:
        x_ref, wh_ref, bh_ref, wl_ref, bl_ref, o_ref = refs
    else:
        x_ref, wl_ref, bl_ref, o_ref = refs

    act = x_ref[...]                                     # bf16 activation
    for l in range(num_hidden):                          # static unroll
        y = jnp.dot(act, wh_ref[l], preferred_element_type=jnp.float32)  # MXU
        y = jnp.maximum(y + bh_ref[l], 0.0)              # bias + ReLU in f32
        act = y.astype(jnp.bfloat16)                     # bf16 inter-layer act
    out = jnp.dot(act, wl_ref[...], preferred_element_type=jnp.float32) + bl_ref[...]
    o_ref[...] = out.astype(o_ref.dtype)


@functools.partial(
    jax.jit,
    static_argnames=("dim_out", "num_hidden", "d_pad", "d_out_pad", "single_buffer"))
def _mlp_forward_2d(x2d, w_hidden, b_hidden, w_last, b_last, *,
                    dim_out, num_hidden, d_pad, d_out_pad, single_buffer):
    m, d_in = x2d.shape

    # Pad only the feature (lane) dim and cast to bf16: halves the dominant
    # input HBM read and matches the MXU operand dtype.  M is NOT padded.
    xp = jnp.pad(x2d.astype(jnp.bfloat16), ((0, 0), (0, d_pad - d_in)))

    tile_m = _choose_tile_m(m)
    grid = (pl.cdiv(m, tile_m),)

    in_specs = [pl.BlockSpec((tile_m, d_pad), lambda i: (i, 0))]
    operands = [xp]
    param_bytes = w_last.size * 2 + b_last.size * 4
    if num_hidden > 0:
        in_specs.append(_param_spec((num_hidden, d_pad, d_pad), single_buffer))
        in_specs.append(_param_spec((num_hidden, 1, d_pad), single_buffer))
        operands += [w_hidden, b_hidden]
        param_bytes += w_hidden.size * 2 + b_hidden.size * 4
    in_specs.append(_param_spec((d_pad, d_out_pad), single_buffer))
    in_specs.append(_param_spec((1, d_out_pad), single_buffer))
    operands += [w_last, b_last]

    # VMEM budget: double-buffered activation in/out tiles + (single-buffered)
    # parameter stack + headroom for in-kernel f32 activation staging, capped
    # at 75% of the physical VMEM of the current TPU generation.
    # TODO(synk): if the parameter stack alone outgrows VMEM (very large hidden
    # dims / layer counts), stream the weights per layer with a manual
    # make_async_copy double buffer instead of keeping the whole stack resident.
    vmem_need = (2 * tile_m * d_pad * 2                      # x tiles (bf16, 2 bufs)
                 + 2 * tile_m * d_out_pad * 4                # out tiles (f32, 2 bufs)
                 + param_bytes * (1 if single_buffer else 2)
                 + 4 * tile_m * max(d_pad, d_out_pad) * 4)   # f32 act headroom
    vmem_limit = int(min(max(2 * vmem_need, 32 * 1024 * 1024),
                         int(0.75 * _vmem_capacity_bytes())))

    flops = 2 * m * (num_hidden * d_pad * d_pad + d_pad * d_out_pad)
    bytes_accessed = int(xp.size * 2 + m * d_out_pad * 4 + param_bytes)

    out = pl.pallas_call(
        functools.partial(_mlp_fused_kernel, num_hidden=num_hidden),
        out_shape=jax.ShapeDtypeStruct((m, d_out_pad), jnp.float32),
        grid=grid,
        in_specs=in_specs,
        out_specs=pl.BlockSpec((tile_m, d_out_pad), lambda i: (i, 0)),
        compiler_params=pltpu.CompilerParams(
            dimension_semantics=("parallel",),   # M axis: megacore-shardable
            vmem_limit_bytes=vmem_limit),
        cost_estimate=pl.CostEstimate(
            flops=flops, transcendentals=0, bytes_accessed=bytes_accessed),
    )(*operands)
    return out[:, :dim_out]


_FLAGS = {"single_buffer": True}  # flipped off once if pl.Buffered(1) is rejected


class MLPPallas:
    """JAX/Pallas port of lib.renderer.MLP (forward pass)."""

    def __init__(self, dim_in, dim_out, dim_hidden, num_layers, bias=True, key=None):
        self.dim_in = dim_in
        self.dim_out = dim_out
        self.dim_hidden = dim_hidden
        self.num_layers = num_layers
        if key is None:
            key = jax.random.PRNGKey(0)

        # Hidden activations (and the padded input) share one lane-aligned
        # width; the output keeps its own (usually much narrower) width.
        hid_in_dims = [dim_in] + [dim_hidden] * (num_layers - 1)
        self.d_pad = _round_up(max(hid_in_dims), 128)
        self.d_out_pad = _round_up(dim_out, 128)

        self.weights, self.biases = [], []   # true-shape f32 (for reference)
        wh_list, bh_list = [], []
        for l in range(num_layers):
            d_in_l = dim_in if l == 0 else dim_hidden
            d_out_l = dim_out if l == num_layers - 1 else dim_hidden
            key, kw, kb = jax.random.split(key, 3)
            bound = 1.0 / (d_in_l ** 0.5)    # nn.Linear default uniform bound
            w = jax.random.uniform(kw, (d_in_l, d_out_l), jnp.float32, -bound, bound)
            b = (jax.random.uniform(kb, (d_out_l,), jnp.float32, -bound, bound)
                 if bias else jnp.zeros((d_out_l,), jnp.float32))
            self.weights.append(w)
            self.biases.append(b)

            out_pad = self.d_out_pad if l == num_layers - 1 else self.d_pad
            w_pad = jnp.zeros((self.d_pad, out_pad), jnp.bfloat16)
            w_pad = w_pad.at[:d_in_l, :d_out_l].set(w.astype(jnp.bfloat16))
            b_pad = jnp.zeros((1, out_pad), jnp.float32).at[0, :d_out_l].set(b)
            if l == num_layers - 1:
                self.w_last, self.b_last = w_pad, b_pad
            else:
                wh_list.append(w_pad)
                bh_list.append(b_pad)

        if wh_list:
            self.w_hidden = jnp.stack(wh_list)   # [L-1, d_pad, d_pad] bf16
            self.b_hidden = jnp.stack(bh_list)   # [L-1, 1, d_pad]     f32
        else:
            self.w_hidden = None
            self.b_hidden = None

    def __call__(self, x):
        # x: [..., dim_in] (any leading dims, like PyTorch nn.Linear)
        lead = x.shape[:-1]
        x2d = x.reshape(-1, x.shape[-1])

        def run(single_buffer):
            return _mlp_forward_2d(
                x2d, self.w_hidden, self.b_hidden, self.w_last, self.b_last,
                dim_out=self.dim_out, num_hidden=self.num_layers - 1,
                d_pad=self.d_pad, d_out_pad=self.d_out_pad,
                single_buffer=single_buffer)

        if _FLAGS["single_buffer"]:
            try:
                out2d = run(True)
            except Exception:
                # pl.Buffered(1) not accepted on this jax/libtpu -> fall back
                # to default (double-buffered) parameter blocks.
                _FLAGS["single_buffer"] = False
                out2d = run(False)
        else:
            out2d = run(False)

        return out2d.reshape(*lead, self.dim_out).astype(x.dtype)


def _reference_forward(mlp, x):
    # Pure-JAX reference mirroring the kernel's bf16-operand / f32-accumulate math.
    lead = x.shape[:-1]
    y = x.reshape(-1, x.shape[-1]).astype(jnp.float32)
    for l in range(mlp.num_layers):
        w = mlp.weights[l].astype(jnp.bfloat16).astype(jnp.float32)
        yq = y.astype(jnp.bfloat16).astype(jnp.float32)
        y = yq @ w + mlp.biases[l][None, :]
        if l != mlp.num_layers - 1:
            y = jnp.maximum(y, 0.0)
    return y.reshape(*lead, mlp.dim_out)


if __name__ == "__main__":
    key = jax.random.PRNGKey(0)
    k_x, k_params = jax.random.split(key)

    dim_in, dim_hidden, dim_out, num_layers = 16, 32, 8, 3
    batch, seq = 2, 8

    mlp = MLPPallas(dim_in, dim_out, dim_hidden, num_layers, bias=True, key=k_params)
    x = jax.random.normal(k_x, (batch, seq, dim_in), jnp.float32)

    out = jax.block_until_ready(mlp(x))
    ref = _reference_forward(mlp, x)

    assert out.shape == (batch, seq, dim_out), out.shape
    assert jnp.allclose(out, ref, atol=1e-3, rtol=1e-3), "mismatch vs reference"

    print("KERNEL_OK")
</pallas_src>

<mosaic_0001>
module attributes {stable_mosaic.version = 11 : i64} {
  func.func @_mlp_fused_kernel(%arg0: i32, %arg1: memref<16x128xbf16, #tpu.memory_space<vmem>>, %arg2: memref<2x128x128xbf16, #tpu.memory_space<vmem>>, %arg3: memref<2x1x128xf32, #tpu.memory_space<vmem>>, %arg4: memref<128x128xbf16, #tpu.memory_space<vmem>>, %arg5: memref<1x128xf32, #tpu.memory_space<vmem>>, %arg6: memref<16x128xf32, #tpu.memory_space<vmem>>) attributes {dimension_semantics = [#tpu.dimension_semantics<parallel>], iteration_bounds = array<i64: 1>, scalar_prefetch = 0 : i64, scratch_operands = 0 : i64, tpu.core_type = #tpu.core_type<tc>, window_params = [{transform_indices = @transform_0, window_bounds = array<i64: 16, 128>}, {pipeline_mode = #tpu.pipeline_mode<synchronous>, transform_indices = @transform_1, window_bounds = array<i64: 2, 128, 128>}, {pipeline_mode = #tpu.pipeline_mode<synchronous>, transform_indices = @transform_2, window_bounds = array<i64: 2, 1, 128>}, {pipeline_mode = #tpu.pipeline_mode<synchronous>, transform_indices = @transform_3, window_bounds = array<i64: 128, 128>}, {pipeline_mode = #tpu.pipeline_mode<synchronous>, transform_indices = @transform_4, window_bounds = array<i64: 1, 128>}, {transform_indices = @transform_5, window_bounds = array<i64: 16, 128>}]} {
    %c0 = arith.constant 0 : index
    %c0_0 = arith.constant 0 : index
    %0 = vector.load %arg1[%c0, %c0_0] : memref<16x128xbf16, #tpu.memory_space<vmem>>, vector<16x128xbf16>
    %c0_1 = arith.constant 0 : index
    %c0_2 = arith.constant 0 : index
    %c0_3 = arith.constant 0 : index
    %1 = vector.load %arg2[%c0_1, %c0_2, %c0_3] : memref<2x128x128xbf16, #tpu.memory_space<vmem>>, vector<1x128x128xbf16>
    %2 = vector.shape_cast %1 : vector<1x128x128xbf16> to vector<128x128xbf16>
    %cst = arith.constant dense<0.000000e+00> : vector<16x128xf32>
    %3 = tpu.matmul %0, %2, %cst {dimension_numbers = #tpu.dot_dimension_numbers<[1], [0], [0], [1], [0, 0, 1, 1], [], []>} : vector<16x128xbf16>, vector<128x128xbf16>, vector<16x128xf32> -> vector<16x128xf32>
    %c0_4 = arith.constant 0 : index
    %c0_5 = arith.constant 0 : index
    %c0_6 = arith.constant 0 : index
    %4 = vector.load %arg3[%c0_4, %c0_5, %c0_6] : memref<2x1x128xf32, #tpu.memory_space<vmem>>, vector<1x1x128xf32>
    %5 = vector.shape_cast %4 : vector<1x1x128xf32> to vector<1x128xf32>
    %6 = vector.broadcast %5 : vector<1x128xf32> to vector<16x128xf32>
    %7 = arith.addf %3, %6 : vector<16x128xf32>
    %cst_7 = arith.constant 0.000000e+00 : f32
    %8 = vector.broadcast %cst_7 : f32 to vector<16x128xf32>
    %9 = arith.maximumf %7, %8 : vector<16x128xf32>
    %10 = arith.truncf %9 : vector<16x128xf32> to vector<16x128xbf16>
    %c1 = arith.constant 1 : index
    %c0_8 = arith.constant 0 : index
    %c0_9 = arith.constant 0 : index
    %11 = vector.load %arg2[%c1, %c0_8, %c0_9] : memref<2x128x128xbf16, #tpu.memory_space<vmem>>, vector<1x128x128xbf16>
    %12 = vector.shape_cast %11 : vector<1x128x128xbf16> to vector<128x128xbf16>
    %cst_10 = arith.constant dense<0.000000e+00> : vector<16x128xf32>
    %13 = tpu.matmul %10, %12, %cst_10 {dimension_numbers = #tpu.dot_dimension_numbers<[1], [0], [0], [1], [0, 0, 1, 1], [], []>} : vector<16x128xbf16>, vector<128x128xbf16>, vector<16x128xf32> -> vector<16x128xf32>
    %c1_11 = arith.constant 1 : index
    %c0_12 = arith.constant 0 : index
    %c0_13 = arith.constant 0 : index
    %14 = vector.load %arg3[%c1_11, %c0_12, %c0_13] : memref<2x1x128xf32, #tpu.memory_space<vmem>>, vector<1x1x128xf32>
    %15 = vector.shape_cast %14 : vector<1x1x128xf32> to vector<1x128xf32>
    %16 = vector.broadcast %15 : vector<1x128xf32> to vector<16x128xf32>
    %17 = arith.addf %13, %16 : vector<16x128xf32>
    %cst_14 = arith.constant 0.000000e+00 : f32
    %18 = vector.broadcast %cst_14 : f32 to vector<16x128xf32>
    %19 = arith.maximumf %17, %18 : vector<16x128xf32>
    %20 = arith.truncf %19 : vector<16x128xf32> to vector<16x128xbf16>
    %c0_15 = arith.constant 0 : index
    %c0_16 = arith.constant 0 : index
    %21 = vector.load %arg4[%c0_15, %c0_16] : memref<128x128xbf16, #tpu.memory_space<vmem>>, vector<128x128xbf16>
    %cst_17 = arith.constant dense<0.000000e+00> : vector<16x128xf32>
    %22 = tpu.matmul %20, %21, %cst_17 {dimension_numbers = #tpu.dot_dimension_numbers<[1], [0], [0], [1], [0, 0, 1, 1], [], []>} : vector<16x128xbf16>, vector<128x128xbf16>, vector<16x128xf32> -> vector<16x128xf32>
    %c0_18 = arith.constant 0 : index
    %c0_19 = arith.constant 0 : index
    %23 = vector.load %arg5[%c0_18, %c0_19] : memref<1x128xf32, #tpu.memory_space<vmem>>, vector<1x128xf32>
    %24 = vector.broadcast %23 : vector<1x128xf32> to vector<16x128xf32>
    %25 = arith.addf %22, %24 : vector<16x128xf32>
    %c0_20 = arith.constant 0 : index
    %c0_21 = arith.constant 0 : index
    %26 = vector.load %arg6[%c0_20, %c0_21] : memref<16x128xf32, #tpu.memory_space<vmem>>, vector<16x128xf32>
    tpu.vector_store %arg6[%c0_20, %c0_21], %25 {strides = array<i32>} : memref<16x128xf32, #tpu.memory_space<vmem>>, vector<16x128xf32>,
    return
  }
  func.func @transform_0(%arg0: i32) -> (i32, i32) {
    %c0_i32 = arith.constant 0 : i32
    %c0_i32_0 = arith.constant 0 : i32
    return %arg0, %c0_i32 : i32, i32
  }
  func.func @transform_1(%arg0: i32) -> (i32, i32, i32) {
    %c0_i32 = arith.constant 0 : i32
    %c0_i32_0 = arith.constant 0 : i32
    %c0_i32_1 = arith.constant 0 : i32
    %c0_i32_2 = arith.constant 0 : i32
    return %c0_i32, %c0_i32_0, %c0_i32_1 : i32, i32, i32
  }
  func.func @transform_2(%arg0: i32) -> (i32, i32, i32) {
    %c0_i32 = arith.constant 0 : i32
    %c0_i32_0 = arith.constant 0 : i32
    %c0_i32_1 = arith.constant 0 : i32
    %c0_i32_2 = arith.constant 0 : i32
    return %c0_i32, %c0_i32_0, %c0_i32_1 : i32, i32, i32
  }
  func.func @transform_3(%arg0: i32) -> (i32, i32) {
    %c0_i32 = arith.constant 0 : i32
    %c0_i32_0 = arith.constant 0 : i32
    %c0_i32_1 = arith.constant 0 : i32
    return %c0_i32, %c0_i32_0 : i32, i32
  }
  func.func @transform_4(%arg0: i32) -> (i32, i32) {
    %c0_i32 = arith.constant 0 : i32
    %c0_i32_0 = arith.constant 0 : i32
    %c0_i32_1 = arith.constant 0 : i32
    return %c0_i32, %c0_i32_0 : i32, i32
  }
  func.func @transform_5(%arg0: i32) -> (i32, i32) {
    %c0_i32 = arith.constant 0 : i32
    %c0_i32_0 = arith.constant 0 : i32
    return %arg0, %c0_i32 : i32, i32
  }
}

module attributes {stable_mosaic.version = 11 : i64} {
  func.func @_mlp_fused_kernel(%arg0: i32, %arg1: memref<16x128xbf16, #tpu.memory_space<vmem>>, %arg2: memref<2x128x128xbf16, #tpu.memory_space<vmem>>, %arg3: memref<2x1x128xf32, #tpu.memory_space<vmem>>, %arg4: memref<128x128xbf16, #tpu.memory_space<vmem>>, %arg5: memref<1x128xf32, #tpu.memory_space<vmem>>, %arg6: memref<16x128xf32, #tpu.memory_space<vmem>>) attributes {dimension_semantics = [#tpu.dimension_semantics<parallel>], iteration_bounds = array<i64: 1>, scalar_prefetch = 0 : i64, scratch_operands = 0 : i64, tpu.core_type = #tpu.core_type<tc>, window_params = [{transform_indices = @transform_0, window_bounds = array<i64: 16, 128>}, {pipeline_mode = #tpu.pipeline_mode<synchronous>, transform_indices = @transform_1, window_bounds = array<i64: 2, 128, 128>}, {pipeline_mode = #tpu.pipeline_mode<synchronous>, transform_indices = @transform_2, window_bounds = array<i64: 2, 1, 128>}, {pipeline_mode = #tpu.pipeline_mode<synchronous>, transform_indices = @transform_3, window_bounds = array<i64: 128, 128>}, {pipeline_mode = #tpu.pipeline_mode<synchronous>, transform_indices = @transform_4, window_bounds = array<i64: 1, 128>}, {transform_indices = @transform_5, window_bounds = array<i64: 16, 128>}]} {
    %c0 = arith.constant 0 : index
    %c0_0 = arith.constant 0 : index
    %0 = vector.load %arg1[%c0, %c0_0] : memref<16x128xbf16, #tpu.memory_space<vmem>>, vector<16x128xbf16>
    %c0_1 = arith.constant 0 : index
    %c0_2 = arith.constant 0 : index
    %c0_3 = arith.constant 0 : index
    %1 = vector.load %arg2[%c0_1, %c0_2, %c0_3] : memref<2x128x128xbf16, #tpu.memory_space<vmem>>, vector<1x128x128xbf16>
    %2 = vector.shape_cast %1 : vector<1x128x128xbf16> to vector<128x128xbf16>
    %cst = arith.constant dense<0.000000e+00> : vector<16x128xf32>
    %3 = tpu.matmul %0, %2, %cst {dimension_numbers = #tpu.dot_dimension_numbers<[1], [0], [0], [1], [0, 0, 1, 1], [], []>} : vector<16x128xbf16>, vector<128x128xbf16>, vector<16x128xf32> -> vector<16x128xf32>
    %c0_4 = arith.constant 0 : index
    %c0_5 = arith.constant 0 : index
    %c0_6 = arith.constant 0 : index
    %4 = vector.load %arg3[%c0_4, %c0_5, %c0_6] : memref<2x1x128xf32, #tpu.memory_space<vmem>>, vector<1x1x128xf32>
    %5 = vector.shape_cast %4 : vector<1x1x128xf32> to vector<1x128xf32>
    %6 = vector.broadcast %5 : vector<1x128xf32> to vector<16x128xf32>
    %7 = arith.addf %3, %6 : vector<16x128xf32>
    %cst_7 = arith.constant 0.000000e+00 : f32
    %8 = vector.broadcast %cst_7 : f32 to vector<16x128xf32>
    %9 = arith.maximumf %7, %8 : vector<16x128xf32>
    %10 = arith.truncf %9 : vector<16x128xf32> to vector<16x128xbf16>
    %c1 = arith.constant 1 : index
    %c0_8 = arith.constant 0 : index
    %c0_9 = arith.constant 0 : index
    %11 = vector.load %arg2[%c1, %c0_8, %c0_9] : memref<2x128x128xbf16, #tpu.memory_space<vmem>>, vector<1x128x128xbf16>
    %12 = vector.shape_cast %11 : vector<1x128x128xbf16> to vector<128x128xbf16>
    %cst_10 = arith.constant dense<0.000000e+00> : vector<16x128xf32>
    %13 = tpu.matmul %10, %12, %cst_10 {dimension_numbers = #tpu.dot_dimension_numbers<[1], [0], [0], [1], [0, 0, 1, 1], [], []>} : vector<16x128xbf16>, vector<128x128xbf16>, vector<16x128xf32> -> vector<16x128xf32>
    %c1_11 = arith.constant 1 : index
    %c0_12 = arith.constant 0 : index
    %c0_13 = arith.constant 0 : index
    %14 = vector.load %arg3[%c1_11, %c0_12, %c0_13] : memref<2x1x128xf32, #tpu.memory_space<vmem>>, vector<1x1x128xf32>
    %15 = vector.shape_cast %14 : vector<1x1x128xf32> to vector<1x128xf32>
    %16 = vector.broadcast %15 : vector<1x128xf32> to vector<16x128xf32>
    %17 = arith.addf %13, %16 : vector<16x128xf32>
    %cst_14 = arith.constant 0.000000e+00 : f32
    %18 = vector.broadcast %cst_14 : f32 to vector<16x128xf32>
    %19 = arith.maximumf %17, %18 : vector<16x128xf32>
    %20 = arith.truncf %19 : vector<16x128xf32> to vector<16x128xbf16>
    %c0_15 = arith.constant 0 : index
    %c0_16 = arith.constant 0 : index
    %21 = vector.load %arg4[%c0_15, %c0_16] : memref<128x128xbf16, #tpu.memory_space<vmem>>, vector<128x128xbf16>
    %cst_17 = arith.constant dense<0.000000e+00> : vector<16x128xf32>
    %22 = tpu.matmul %20, %21, %cst_17 {dimension_numbers = #tpu.dot_dimension_numbers<[1], [0], [0], [1], [0, 0, 1, 1], [], []>} : vector<16x128xbf16>, vector<128x128xbf16>, vector<16x128xf32> -> vector<16x128xf32>
    %c0_18 = arith.constant 0 : index
    %c0_19 = arith.constant 0 : index
    %23 = vector.load %arg5[%c0_18, %c0_19] : memref<1x128xf32, #tpu.memory_space<vmem>>, vector<1x128xf32>
    %24 = vector.broadcast %23 : vector<1x128xf32> to vector<16x128xf32>
    %25 = arith.addf %22, %24 : vector<16x128xf32>
    %c0_20 = arith.constant 0 : index
    %c0_21 = arith.constant 0 : index
    %26 = vector.load %arg6[%c0_20, %c0_21] : memref<16x128xf32, #tpu.memory_space<vmem>>, vector<16x128xf32>
    tpu.vector_store %arg6[%c0_20, %c0_21], %25 {strides = array<i32>} : memref<16x128xf32, #tpu.memory_space<vmem>>, vector<16x128xf32>,
    return
  }
  func.func @transform_0(%arg0: i32) -> (i32, i32) {
    %c0_i32 = arith.constant 0 : i32
    %c0_i32_0 = arith.constant 0 : i32
    return %arg0, %c0_i32 : i32, i32
  }
  func.func @transform_1(%arg0: i32) -> (i32, i32, i32) {
    %c0_i32 = arith.constant 0 : i32
    %c0_i32_0 = arith.constant 0 : i32
    %c0_i32_1 = arith.constant 0 : i32
    %c0_i32_2 = arith.constant 0 : i32
    return %c0_i32, %c0_i32_0, %c0_i32_1 : i32, i32, i32
  }
  func.func @transform_2(%arg0: i32) -> (i32, i32, i32) {
    %c0_i32 = arith.constant 0 : i32
    %c0_i32_0 = arith.constant 0 : i32
    %c0_i32_1 = arith.constant 0 : i32
    %c0_i32_2 = arith.constant 0 : i32
    return %c0_i32, %c0_i32_0, %c0_i32_1 : i32, i32, i32
  }
  func.func @transform_3(%arg0: i32) -> (i32, i32) {
    %c0_i32 = arith.constant 0 : i32
    %c0_i32_0 = arith.constant 0 : i32
    %c0_i32_1 = arith.constant 0 : i32
    return %c0_i32, %c0_i32_0 : i32, i32
  }
  func.func @transform_4(%arg0: i32) -> (i32, i32) {
    %c0_i32 = arith.constant 0 : i32
    %c0_i32_0 = arith.constant 0 : i32
    %c0_i32_1 = arith.constant 0 : i32
    return %c0_i32, %c0_i32_0 : i32, i32
  }
  func.func @transform_5(%arg0: i32) -> (i32, i32) {
    %c0_i32 = arith.constant 0 : i32
    %c0_i32_0 = arith.constant 0 : i32
    return %arg0, %c0_i32 : i32, i32
  }
}

</mosaic_0001>

<llo_original>
// kernel: _mlp_forward_2d.1
$region0: #{_mlp_forward_2d.1}
  #allocation0 [shape = 'u32[]', space=smem, size = 0x4, offset = 0x4, fixed_abs, tag = 'smem constant byte address 0x4 - core index']
  #allocation1 [shape = 'u32[144,128]{1,0:T(1,128)}', space=vmem, size = 0x12000, scoped, tag = 'internal scratch']
  %s0 = inlined_call_operand.vmem [shape: bf16[16,128], index: 0, kind: input, shape index: {}]
  %s1 = inlined_call_operand.hbm [shape: bf16[2,128,128], index: 1, kind: input, shape index: {}]
  %s2 = inlined_call_operand.vmem [shape: f32[2,1,128], index: 2, kind: input, shape index: {}]
  %s3 = inlined_call_operand.hbm [shape: bf16[128,128], index: 3, kind: input, shape index: {}]
  %s4 = inlined_call_operand.vmem [shape: f32[1,128], index: 4, kind: input, shape index: {}]
  %s5 = inlined_call_operand.vmem [shape: f32[16,128], index: 5, kind: output, shape index: {}]
  %s6 = sld [smem:[#allocation0]]
  $region38: #{_mlp_forward_2d.1} parent=0
    _
  %s8 = ssub.s32 1, %s6
  %s9 = scalar_select 0, %s8, %s6
  $region1: #{_mlp_forward_2d.1} parent=0
    #allocation2 [shape = 'u8[65536]{0}', space=vmem, size = 0x10000, scoped, tag = 'input window, operand 1, single buffered']
    #allocation3 [shape = 's32[1]{0}', space=sflag, size = 0x4, scoped, tag = 'scoped memory for _mlp_forward_2d.1']
    #allocation4 [shape = 'u8[32768]{0}', space=vmem, size = 0x8000, scoped, tag = 'input window, operand 3, single buffered']
    #allocation5 [shape = 's32[1]{0}', space=sflag, size = 0x4, scoped, tag = 'scoped memory for _mlp_forward_2d.1']
    %10 = vsyncpa [#allocation3], 0
    %11 = vsyncpa [#allocation5], 0
    // Predicated region
    $region2: #{_mlp_forward_2d.1} parent=1 // pred_check
      _
    $region3: #{_mlp_forward_2d.1} parent=1 // pred_check_branch
      %13 = sbr.rel (0) target = $region5
    $region4: #{_mlp_forward_2d.1} parent=1 // pred_region
      _
    $region5: #{_mlp_forward_2d.1} parent=1 // pred_fallthru
      _
    // Predicated region
    $region6: #{_mlp_forward_2d.1} parent=1 // pred_check
      _
    $region7: #{_mlp_forward_2d.1} parent=1 // pred_check_branch
      %15 = sbr.rel (0) target = $region9
    $region8: #{_mlp_forward_2d.1} parent=1 // pred_region
      %s17 = ssub.s32 2048, 2048
      %18 = vsyncadd [#allocation3], %s17
      %s19 = sshll.u32 [#allocation2], 4
      %s20 = int_to_ptr.vmem [resolvable:$true] %s19
      %25 = dma.hbm_to_vmem [thread:$0]  %s1, 2048, %s20, [#allocation3], 64, 64, 4
    $region9: #{_mlp_forward_2d.1} parent=1 // pred_fallthru
      _
    // Predicated region
    $region10: #{_mlp_forward_2d.1} parent=1 // pred_check
      _
    $region11: #{_mlp_forward_2d.1} parent=1 // pred_check_branch
      %27 = sbr.rel (0) target = $region13
    $region12: #{_mlp_forward_2d.1} parent=1 // pred_region
      _
    $region13: #{_mlp_forward_2d.1} parent=1 // pred_fallthru
      _
    // Predicated region
    $region14: #{_mlp_forward_2d.1} parent=1 // pred_check
      _
    $region15: #{_mlp_forward_2d.1} parent=1 // pred_check_branch
      %29 = sbr.rel (0) target = $region17
    $region16: #{_mlp_forward_2d.1} parent=1 // pred_region
      %s31 = ssub.s32 1024, 1024
      %32 = vsyncadd [#allocation5], %s31
      %s33 = sshll.u32 [#allocation4], 4
      %s34 = int_to_ptr.vmem [resolvable:$true] %s33
      %39 = dma.hbm_to_vmem [thread:$0]  %s3, 1024, %s34, [#allocation5], 64, 64, 4
    $region17: #{_mlp_forward_2d.1} parent=1 // pred_fallthru
      _
    // Predicated region
    $region18: #{_mlp_forward_2d.1} parent=1 // pred_check
      _
    $region19: #{_mlp_forward_2d.1} parent=1 // pred_check_branch
      %41 = sbr.rel (0) target = $region21
    $region20: #{_mlp_forward_2d.1} parent=1 // pred_region
      _
    $region21: #{_mlp_forward_2d.1} parent=1 // pred_fallthru
      _
    // Predicated region
    $region22: #{_mlp_forward_2d.1} parent=1 // pred_check
      _
    $region23: #{_mlp_forward_2d.1} parent=1 // pred_check_branch
      %43 = sbr.rel (0) target = $region25
    $region24: #{_mlp_forward_2d.1} parent=1 // pred_region
      %44 = dma.done [#allocation3], 2048
    $region25: #{_mlp_forward_2d.1} parent=1 // pred_fallthru
      _
    // Predicated region
    $region26: #{_mlp_forward_2d.1} parent=1 // pred_check
      _
    $region27: #{_mlp_forward_2d.1} parent=1 // pred_check_branch
      %46 = sbr.rel (0) target = $region29
    $region28: #{_mlp_forward_2d.1} parent=1 // pred_region
      %47 = dma.done [#allocation5], 1024
    $region29: #{_mlp_forward_2d.1} parent=1 // pred_fallthru
      _
    %v49 = vld [vmem:[%s0] sm:$0xf]
    %v50 = vld [vmem:[%s0 + $0x4] sm:$0xf]
    %v51 = vld [vmem:[#allocation2] sm:$0xf]
    %v52 = vld [vmem:[#allocation2 + $0x4] sm:$0xf]
    %v53 = vld [vmem:[#allocation2 + $0x8] sm:$0xf]
    %v54 = vld [vmem:[#allocation2 + $0xc] sm:$0xf]
    %v55 = vld [vmem:[#allocation2 + $0x10] sm:$0xf]
    %v56 = vld [vmem:[#allocation2 + $0x14] sm:$0xf]
    %v57 = vld [vmem:[#allocation2 + $0x18] sm:$0xf]
    %v58 = vld [vmem:[#allocation2 + $0x1c] sm:$0xf]
    %v59 = vld [vmem:[#allocation2 + $0x20] sm:$0xf]
    %v60 = vld [vmem:[#allocation2 + $0x24] sm:$0xf]
    %v61 = vld [vmem:[#allocation2 + $0x28] sm:$0xf]
    %v62 = vld [vmem:[#allocation2 + $0x2c] sm:$0xf]
    %v63 = vld [vmem:[#allocation2 + $0x30] sm:$0xf]
    %v64 = vld [vmem:[#allocation2 + $0x34] sm:$0xf]
    %v65 = vld [vmem:[#allocation2 + $0x38] sm:$0xf]
    %v66 = vld [vmem:[#allocation2 + $0x3c] sm:$0xf]
    %v67 = vld [vmem:[%s2] sm:$0x1]
    %v69 = vlaneseq
    %v70 = vshrl.u32 %v69, 7
    %v71 = vsub.s32 0, %v70
    %v72 = vrot.slane %v67, %v71
    %v76 = vunpack.c.l.b16 %v49
    %v77 = vunpack.c.l.b16 %v50
    %v78 = vpack.c.b16 %v77, %v76
    %v96 = vunpack.c.l.b16 %v51
    %v97 = vunpack.c.l.b16 %v52
    %v98 = vunpack.c.l.b16 %v53
    %v99 = vunpack.c.l.b16 %v54
    %v100 = vunpack.c.l.b16 %v55
    %v101 = vunpack.c.l.b16 %v56
    %v102 = vunpack.c.l.b16 %v57
    %v103 = vunpack.c.l.b16 %v58
    %v104 = vunpack.c.l.b16 %v59
    %v105 = vunpack.c.l.b16 %v60
    %v106 = vunpack.c.l.b16 %v61
    %v107 = vunpack.c.l.b16 %v62
    %v108 = vunpack.c.l.b16 %v63
    %v109 = vunpack.c.l.b16 %v64
    %v110 = vunpack.c.l.b16 %v65
    %v111 = vunpack.c.l.b16 %v66
    %v112 = vpack.c.b16 %v97, %v96
    %v113 = vpack.c.b16 %v99, %v98
    %v114 = vpack.c.b16 %v101, %v100
    %v115 = vpack.c.b16 %v103, %v102
    %v116 = vpack.c.b16 %v105, %v104
    %v117 = vpack.c.b16 %v107, %v106
    %v118 = vpack.c.b16 %v109, %v108
    %v119 = vpack.c.b16 %v111, %v110
    %128 = vmatprep.subr.bf16.mxu0 0
    %129 = vmatpush1.bf16.msra.mxu0 %v112
    %130 = vmatprep.subr.bf16.mxu0 0
    %131 = vmatpush1.bf16.msra.mxu0 %v113
    %132 = vmatprep.subr.bf16.mxu0 0
    %133 = vmatpush1.bf16.msra.mxu0 %v114
    %134 = vmatprep.subr.bf16.mxu0 0
    %135 = vmatpush1.bf16.msra.mxu0 %v115
    %136 = vmatprep.subr.bf16.mxu0 0
    %137 = vmatpush1.bf16.msra.mxu0 %v116
    %138 = vmatprep.subr.bf16.mxu0 0
    %139 = vmatpush1.bf16.msra.mxu0 %v117
    %140 = vmatprep.subr.bf16.mxu0 0
    %141 = vmatpush1.bf16.msra.mxu0 %v118
    %142 = vmatprep.subr.bf16.mxu0 0
    %143 = vmatpush1.bf16.msra.mxu0 %v119
    %144 = vmatprep.subr.bf16.mxu0 0
    %145 = vmatpush1.bf16.msra.mxu0 0
    %146 = vmatprep.subr.bf16.mxu0 0
    %147 = vmatpush1.bf16.msra.mxu0 0
    %148 = vmatprep.subr.bf16.mxu0 0
    %149 = vmatpush1.bf16.msra.mxu0 0
    %150 = vmatprep.subr.bf16.mxu0 0
    %151 = vmatpush1.bf16.msra.mxu0 0
    %152 = vmatprep.subr.bf16.mxu0 0
    %153 = vmatpush1.bf16.msra.mxu0 0
    %154 = vmatprep.subr.bf16.mxu0 0
    %155 = vmatpush1.bf16.msra.mxu0 0
    %156 = vmatprep.subr.bf16.mxu0 0
    %157 = vmatpush1.bf16.msra.mxu0 0
    %158 = vmatprep.subr.bf16.mxu0 0
    %159 = vmatpush1.bf16.msra.mxu0 0
    %160 = vmatprep.mubr.bf16.mxu0 0
    %161 = vmatmul.mubr.bf16.gmra.mrb[0].mxu0 %v78
    %v162 = vpop.f32.mrb[0].mxu0
    %v163 = vadd.f32 %v72, %v162
    %v164 = vpop.f32.mrb[0].mxu0
    %v165 = vpop.f32.mrb[0].mxu0
    %v166 = vadd.f32 %v72, %v165
    %v167 = vpop.f32.mrb[0].mxu0
    %168 = vdwg.mxu0
    %v169 = vmax.f32 %v163, 0.0
    %v170 = vmax.f32 %v166, 0.0
    %v171 = vpack.c.bf16 %v170, %v169
    %s172 = scalar_lea.vmem [#allocation2], 64
    %v173 = vld [vmem:[%s172] sm:$0xf]
    %v174 = vld [vmem:[%s172 + $0x4] sm:$0xf]
    %v175 = vld [vmem:[%s172 + $0x8] sm:$0xf]
    %v176 = vld [vmem:[%s172 + $0xc] sm:$0xf]
    %v177 = vld [vmem:[%s172 + $0x10] sm:$0xf]
    %v178 = vld [vmem:[%s172 + $0x14] sm:$0xf]
    %v179 = vld [vmem:[%s172 + $0x18] sm:$0xf]
    %v180 = vld [vmem:[%s172 + $0x1c] sm:$0xf]
    %v181 = vld [vmem:[%s172 + $0x20] sm:$0xf]
    %v182 = vld [vmem:[%s172 + $0x24] sm:$0xf]
    %v183 = vld [vmem:[%s172 + $0x28] sm:$0xf]
    %v184 = vld [vmem:[%s172 + $0x2c] sm:$0xf]
    %v185 = vld [vmem:[%s172 + $0x30] sm:$0xf]
    %v186 = vld [vmem:[%s172 + $0x34] sm:$0xf]
    %v187 = vld [vmem:[%s172 + $0x38] sm:$0xf]
    %v188 = vld [vmem:[%s172 + $0x3c] sm:$0xf]
    %s189 = scalar_lea.vmem %s2, 1
    %v190 = vld [vmem:[%s189] sm:$0x1]
    %v192 = vlaneseq
    %v193 = vshrl.u32 %v192, 7
    %v194 = vsub.s32 0, %v193
    %v195 = vrot.slane %v190, %v194
    %v213 = vunpack.c.l.b16 %v173
    %v214 = vunpack.c.l.b16 %v174
    %v215 = vunpack.c.l.b16 %v175
    %v216 = vunpack.c.l.b16 %v176
    %v217 = vunpack.c.l.b16 %v177
    %v218 = vunpack.c.l.b16 %v178
    %v219 = vunpack.c.l.b16 %v179
    %v220 = vunpack.c.l.b16 %v180
    %v221 = vunpack.c.l.b16 %v181
    %v222 = vunpack.c.l.b16 %v182
    %v223 = vunpack.c.l.b16 %v183
    %v224 = vunpack.c.l.b16 %v184
    %v225 = vunpack.c.l.b16 %v185
    %v226 = vunpack.c.l.b16 %v186
    %v227 = vunpack.c.l.b16 %v187
    %v228 = vunpack.c.l.b16 %v188
    %v229 = vpack.c.b16 %v214, %v213
    %v230 = vpack.c.b16 %v216, %v215
    %v231 = vpack.c.b16 %v218, %v217
    %v232 = vpack.c.b16 %v220, %v219
    %v233 = vpack.c.b16 %v222, %v221
    %v234 = vpack.c.b16 %v224, %v223
    %v235 = vpack.c.b16 %v226, %v225
    %v236 = vpack.c.b16 %v228, %v227
    %245 = vmatprep.subr.bf16.mxu0 0
    %246 = vmatpush1.bf16.msra.mxu0 %v229
    %247 = vmatprep.subr.bf16.mxu0 0
    %248 = vmatpush1.bf16.msra.mxu0 %v230
    %249 = vmatprep.subr.bf16.mxu0 0
    %250 = vmatpush1.bf16.msra.mxu0 %v231
    %251 = vmatprep.subr.bf16.mxu0 0
    %252 = vmatpush1.bf16.msra.mxu0 %v232
    %253 = vmatprep.subr.bf16.mxu0 0
    %254 = vmatpush1.bf16.msra.mxu0 %v233
    %255 = vmatprep.subr.bf16.mxu0 0
    %256 = vmatpush1.bf16.msra.mxu0 %v234
    %257 = vmatprep.subr.bf16.mxu0 0
    %258 = vmatpush1.bf16.msra.mxu0 %v235
    %259 = vmatprep.subr.bf16.mxu0 0
    %260 = vmatpush1.bf16.msra.mxu0 %v236
    %261 = vmatprep.subr.bf16.mxu0 0
    %262 = vmatpush1.bf16.msra.mxu0 0
    %263 = vmatprep.subr.bf16.mxu0 0
    %264 = vmatpush1.bf16.msra.mxu0 0
    %265 = vmatprep.subr.bf16.mxu0 0
    %266 = vmatpush1.bf16.msra.mxu0 0
    %267 = vmatprep.subr.bf16.mxu0 0
    %268 = vmatpush1.bf16.msra.mxu0 0
    %269 = vmatprep.subr.bf16.mxu0 0
    %270 = vmatpush1.bf16.msra.mxu0 0
    %271 = vmatprep.subr.bf16.mxu0 0
    %272 = vmatpush1.bf16.msra.mxu0 0
    %273 = vmatprep.subr.bf16.mxu0 0
    %274 = vmatpush1.bf16.msra.mxu0 0
    %275 = vmatprep.subr.bf16.mxu0 0
    %276 = vmatpush1.bf16.msra.mxu0 0
    %277 = vmatprep.mubr.bf16.mxu0 0
    %278 = vmatmul.mubr.bf16.gmra.mrb[0].mxu0 %v171
    %v279 = vpop.f32.mrb[0].mxu0
    %v280 = vadd.f32 %v195, %v279
    %v281 = vpop.f32.mrb[0].mxu0
    %v282 = vpop.f32.mrb[0].mxu0
    %v283 = vadd.f32 %v195, %v282
    %v284 = vpop.f32.mrb[0].mxu0
    %285 = vdwg.mxu0
    %v286 = vmax.f32 %v280, 0.0
    %v287 = vmax.f32 %v283, 0.0
    %v288 = vpack.c.bf16 %v287, %v286
    %v289 = vld [vmem:[#allocation4] sm:$0xf]
    %v290 = vld [vmem:[#allocation4 + $0x4] sm:$0xf]
    %v291 = vld [vmem:[#allocation4 + $0x8] sm:$0xf]
    %v292 = vld [vmem:[#allocation4 + $0xc] sm:$0xf]
    %v293 = vld [vmem:[#allocation4 + $0x10] sm:$0xf]
    %v294 = vld [vmem:[#allocation4 + $0x14] sm:$0xf]
    %v295 = vld [vmem:[#allocation4 + $0x18] sm:$0xf]
    %v296 = vld [vmem:[#allocation4 + $0x1c] sm:$0xf]
    %v297 = vld [vmem:[#allocation4 + $0x20] sm:$0xf]
    %v298 = vld [vmem:[#allocation4 + $0x24] sm:$0xf]
    %v299 = vld [vmem:[#allocation4 + $0x28] sm:$0xf]
    %v300 = vld [vmem:[#allocation4 + $0x2c] sm:$0xf]
    %v301 = vld [vmem:[#allocation4 + $0x30] sm:$0xf]
    %v302 = vld [vmem:[#allocation4 + $0x34] sm:$0xf]
    %v303 = vld [vmem:[#allocation4 + $0x38] sm:$0xf]
    %v304 = vld [vmem:[#allocation4 + $0x3c] sm:$0xf]
    %v305 = vld [vmem:[%s4] sm:$0x1]
    %v307 = vlaneseq
    %v308 = vshrl.u32 %v307, 7
    %v309 = vsub.s32 0, %v308
    %v310 = vrot.slane %v305, %v309
    %v328 = vunpack.c.l.b16 %v289
    %v329 = vunpack.c.l.b16 %v290
    %v330 = vunpack.c.l.b16 %v291
    %v331 = vunpack.c.l.b16 %v292
    %v332 = vunpack.c.l.b16 %v293
    %v333 = vunpack.c.l.b16 %v294
    %v334 = vunpack.c.l.b16 %v295
    %v335 = vunpack.c.l.b16 %v296
    %v336 = vunpack.c.l.b16 %v297
    %v337 = vunpack.c.l.b16 %v298
    %v338 = vunpack.c.l.b16 %v299
    %v339 = vunpack.c.l.b16 %v300
    %v340 = vunpack.c.l.b16 %v301
    %v341 = vunpack.c.l.b16 %v302
    %v342 = vunpack.c.l.b16 %v303
    %v343 = vunpack.c.l.b16 %v304
    %v344 = vpack.c.b16 %v329, %v328
    %v345 = vpack.c.b16 %v331, %v330
    %v346 = vpack.c.b16 %v333, %v332
    %v347 = vpack.c.b16 %v335, %v334
    %v348 = vpack.c.b16 %v337, %v336
    %v349 = vpack.c.b16 %v339, %v338
    %v350 = vpack.c.b16 %v341, %v340
    %v351 = vpack.c.b16 %v343, %v342
    %360 = vmatprep.subr.bf16.mxu0 0
    %361 = vmatpush1.bf16.msra.mxu0 %v344
    %362 = vmatprep.subr.bf16.mxu0 0
    %363 = vmatpush1.bf16.msra.mxu0 %v345
    %364 = vmatprep.subr.bf16.mxu0 0
    %365 = vmatpush1.bf16.msra.mxu0 %v346
    %366 = vmatprep.subr.bf16.mxu0 0
    %367 = vmatpush1.bf16.msra.mxu0 %v347
    %368 = vmatprep.subr.bf16.mxu0 0
    %369 = vmatpush1.bf16.msra.mxu0 %v348
    %370 = vmatprep.subr.bf16.mxu0 0
    %371 = vmatpush1.bf16.msra.mxu0 %v349
    %372 = vmatprep.subr.bf16.mxu0 0
    %373 = vmatpush1.bf16.msra.mxu0 %v350
    %374 = vmatprep.subr.bf16.mxu0 0
    %375 = vmatpush1.bf16.msra.mxu0 %v351
    %376 = vmatprep.subr.bf16.mxu0 0
    %377 = vmatpush1.bf16.msra.mxu0 0
    %378 = vmatprep.subr.bf16.mxu0 0
    %379 = vmatpush1.bf16.msra.mxu0 0
    %380 = vmatprep.subr.bf16.mxu0 0
    %381 = vmatpush1.bf16.msra.mxu0 0
    %382 = vmatprep.subr.bf16.mxu0 0
    %383 = vmatpush1.bf16.msra.mxu0 0
    %384 = vmatprep.subr.bf16.mxu0 0
    %385 = vmatpush1.bf16.msra.mxu0 0
    %386 = vmatprep.subr.bf16.mxu0 0
    %387 = vmatpush1.bf16.msra.mxu0 0
    %388 = vmatprep.subr.bf16.mxu0 0
    %389 = vmatpush1.bf16.msra.mxu0 0
    %390 = vmatprep.subr.bf16.mxu0 0
    %391 = vmatpush1.bf16.msra.mxu0 0
    %392 = vmatprep.mubr.bf16.mxu0 0
    %393 = vmatmul.mubr.bf16.gmra.mrb[0].mxu0 %v288
    %v394 = vpop.f32.mrb[0].mxu0
    %v395 = vadd.f32 %v310, %v394
    %v396 = vpop.f32.mrb[0].mxu0
    %v397 = vpop.f32.mrb[0].mxu0
    %v398 = vadd.f32 %v310, %v397
    %v399 = vpop.f32.mrb[0].mxu0
    %400 = vdwg.mxu0
    %401 = vst [vmem:[%s5] sm:$0xff] %v395
    %402 = vst [vmem:[%s5 + $0x8] sm:$0xff] %v398
    // Predicated region
    $region30: #{_mlp_forward_2d.1} parent=1 // pred_check
      _
    $region31: #{_mlp_forward_2d.1} parent=1 // pred_check_branch
      %404 = sbr.rel (0) target = $region33
    $region32: #{_mlp_forward_2d.1} parent=1 // pred_region
      _
    $region33: #{_mlp_forward_2d.1} parent=1 // pred_fallthru
      _
    // Predicated region
    $region34: #{_mlp_forward_2d.1} parent=1 // pred_check
      _
    $region35: #{_mlp_forward_2d.1} parent=1 // pred_check_branch
      %406 = sbr.rel (0) target = $region37
    $region36: #{_mlp_forward_2d.1} parent=1 // pred_region
      _
    $region37: #{_mlp_forward_2d.1} parent=1 // pred_fallthru
      _
    %407 = vsyncpa [#allocation3], 1
    %408 = vsyncpa [#allocation5], 1

// kernel: _mlp_forward_2d.1
$region0: #{_mlp_forward_2d.1}
  #allocation0 [shape = 'u32[]', space=smem, size = 0x4, offset = 0x4, fixed_abs, tag = 'smem constant byte address 0x4 - core index']
  #allocation1 [shape = 'u32[144,128]{1,0:T(1,128)}', space=vmem, size = 0x12000, scoped, tag = 'internal scratch']
  %s0 = inlined_call_operand.vmem [shape: bf16[16,128], index: 0, kind: input, shape index: {}]
  %s1 = inlined_call_operand.hbm [shape: bf16[2,128,128], index: 1, kind: input, shape index: {}]
  %s2 = inlined_call_operand.vmem [shape: f32[2,1,128], index: 2, kind: input, shape index: {}]
  %s3 = inlined_call_operand.hbm [shape: bf16[128,128], index: 3, kind: input, shape index: {}]
  %s4 = inlined_call_operand.vmem [shape: f32[1,128], index: 4, kind: input, shape index: {}]
  %s5 = inlined_call_operand.vmem [shape: f32[16,128], index: 5, kind: output, shape index: {}]
  %s6 = sld [smem:[#allocation0]]
  $region38: #{_mlp_forward_2d.1} parent=0
    _
  %s8 = ssub.s32 1, %s6
  %s9 = scalar_select 0, %s8, %s6
  $region1: #{_mlp_forward_2d.1} parent=0
    #allocation2 [shape = 'u8[65536]{0}', space=vmem, size = 0x10000, scoped, tag = 'input window, operand 1, single buffered']
    #allocation3 [shape = 's32[1]{0}', space=sflag, size = 0x4, scoped, tag = 'scoped memory for _mlp_forward_2d.1']
    #allocation4 [shape = 'u8[32768]{0}', space=vmem, size = 0x8000, scoped, tag = 'input window, operand 3, single buffered']
    #allocation5 [shape = 's32[1]{0}', space=sflag, size = 0x4, scoped, tag = 'scoped memory for _mlp_forward_2d.1']
    %10 = vsyncpa [#allocation3], 0
    %11 = vsyncpa [#allocation5], 0
    // Predicated region
    $region2: #{_mlp_forward_2d.1} parent=1 // pred_check
      _
    $region3: #{_mlp_forward_2d.1} parent=1 // pred_check_branch
      %13 = sbr.rel (0) target = $region5
    $region4: #{_mlp_forward_2d.1} parent=1 // pred_region
      _
    $region5: #{_mlp_forward_2d.1} parent=1 // pred_fallthru
      _
    // Predicated region
    $region6: #{_mlp_forward_2d.1} parent=1 // pred_check
      _
    $region7: #{_mlp_forward_2d.1} parent=1 // pred_check_branch
      %15 = sbr.rel (0) target = $region9
    $region8: #{_mlp_forward_2d.1} parent=1 // pred_region
      %s17 = ssub.s32 2048, 2048
      %18 = vsyncadd [#allocation3], %s17
      %s19 = sshll.u32 [#allocation2], 4
      %s20 = int_to_ptr.vmem [resolvable:$true] %s19
      %25 = dma.hbm_to_vmem [thread:$0]  %s1, 2048, %s20, [#allocation3], 64, 64, 4
    $region9: #{_mlp_forward_2d.1} parent=1 // pred_fallthru
      _
    // Predicated region
    $region10: #{_mlp_forward_2d.1} parent=1 // pred_check
      _
    $region11: #{_mlp_forward_2d.1} parent=1 // pred_check_branch
      %27 = sbr.rel (0) target = $region13
    $region12: #{_mlp_forward_2d.1} parent=1 // pred_region
      _
    $region13: #{_mlp_forward_2d.1} parent=1 // pred_fallthru
      _
    // Predicated region
    $region14: #{_mlp_forward_2d.1} parent=1 // pred_check
      _
    $region15: #{_mlp_forward_2d.1} parent=1 // pred_check_branch
      %29 = sbr.rel (0) target = $region17
    $region16: #{_mlp_forward_2d.1} parent=1 // pred_region
      %s31 = ssub.s32 1024, 1024
      %32 = vsyncadd [#allocation5], %s31
      %s33 = sshll.u32 [#allocation4], 4
      %s34 = int_to_ptr.vmem [resolvable:$true] %s33
      %39 = dma.hbm_to_vmem [thread:$0]  %s3, 1024, %s34, [#allocation5], 64, 64, 4
    $region17: #{_mlp_forward_2d.1} parent=1 // pred_fallthru
      _
    // Predicated region
    $region18: #{_mlp_forward_2d.1} parent=1 // pred_check
      _
    $region19: #{_mlp_forward_2d.1} parent=1 // pred_check_branch
      %41 = sbr.rel (0) target = $region21
    $region20: #{_mlp_forward_2d.1} parent=1 // pred_region
      _
    $region21: #{_mlp_forward_2d.1} parent=1 // pred_fallthru
      _
    // Predicated region
    $region22: #{_mlp_forward_2d.1} parent=1 // pred_check
      _
    $region23: #{_mlp_forward_2d.1} parent=1 // pred_check_branch
      %43 = sbr.rel (0) target = $region25
    $region24: #{_mlp_forward_2d.1} parent=1 // pred_region
      %44 = dma.done [#allocation3], 2048
    $region25: #{_mlp_forward_2d.1} parent=1 // pred_fallthru
      _
    // Predicated region
    $region26: #{_mlp_forward_2d.1} parent=1 // pred_check
      _
    $region27: #{_mlp_forward_2d.1} parent=1 // pred_check_branch
      %46 = sbr.rel (0) target = $region29
    $region28: #{_mlp_forward_2d.1} parent=1 // pred_region
      %47 = dma.done [#allocation5], 1024
    $region29: #{_mlp_forward_2d.1} parent=1 // pred_fallthru
      _
    %v49 = vld [vmem:[%s0] sm:$0xf]
    %v50 = vld [vmem:[%s0 + $0x4] sm:$0xf]
    %v51 = vld [vmem:[#allocation2] sm:$0xf]
    %v52 = vld [vmem:[#allocation2 + $0x4] sm:$0xf]
    %v53 = vld [vmem:[#allocation2 + $0x8] sm:$0xf]
    %v54 = vld [vmem:[#allocation2 + $0xc] sm:$0xf]
    %v55 = vld [vmem:[#allocation2 + $0x10] sm:$0xf]
    %v56 = vld [vmem:[#allocation2 + $0x14] sm:$0xf]
    %v57 = vld [vmem:[#allocation2 + $0x18] sm:$0xf]
    %v58 = vld [vmem:[#allocation2 + $0x1c] sm:$0xf]
    %v59 = vld [vmem:[#allocation2 + $0x20] sm:$0xf]
    %v60 = vld [vmem:[#allocation2 + $0x24] sm:$0xf]
    %v61 = vld [vmem:[#allocation2 + $0x28] sm:$0xf]
    %v62 = vld [vmem:[#allocation2 + $0x2c] sm:$0xf]
    %v63 = vld [vmem:[#allocation2 + $0x30] sm:$0xf]
    %v64 = vld [vmem:[#allocation2 + $0x34] sm:$0xf]
    %v65 = vld [vmem:[#allocation2 + $0x38] sm:$0xf]
    %v66 = vld [vmem:[#allocation2 + $0x3c] sm:$0xf]
    %v67 = vld [vmem:[%s2] sm:$0x1]
    %v69 = vlaneseq
    %v70 = vshrl.u32 %v69, 7
    %v71 = vsub.s32 0, %v70
    %v72 = vrot.slane %v67, %v71
    %v76 = vunpack.c.l.b16 %v49
    %v77 = vunpack.c.l.b16 %v50
    %v78 = vpack.c.b16 %v77, %v76
    %v96 = vunpack.c.l.b16 %v51
    %v97 = vunpack.c.l.b16 %v52
    %v98 = vunpack.c.l.b16 %v53
    %v99 = vunpack.c.l.b16 %v54
    %v100 = vunpack.c.l.b16 %v55
    %v101 = vunpack.c.l.b16 %v56
    %v102 = vunpack.c.l.b16 %v57
    %v103 = vunpack.c.l.b16 %v58
    %v104 = vunpack.c.l.b16 %v59
    %v105 = vunpack.c.l.b16 %v60
    %v106 = vunpack.c.l.b16 %v61
    %v107 = vunpack.c.l.b16 %v62
    %v108 = vunpack.c.l.b16 %v63
    %v109 = vunpack.c.l.b16 %v64
    %v110 = vunpack.c.l.b16 %v65
    %v111 = vunpack.c.l.b16 %v66
    %v112 = vpack.c.b16 %v97, %v96
    %v113 = vpack.c.b16 %v99, %v98
    %v114 = vpack.c.b16 %v101, %v100
    %v115 = vpack.c.b16 %v103, %v102
    %v116 = vpack.c.b16 %v105, %v104
    %v117 = vpack.c.b16 %v107, %v106
    %v118 = vpack.c.b16 %v109, %v108
    %v119 = vpack.c.b16 %v111, %v110
    %128 = vmatprep.subr.bf16.mxu0 0
    %129 = vmatpush1.bf16.msra.mxu0 %v112
    %130 = vmatprep.subr.bf16.mxu0 0
    %131 = vmatpush1.bf16.msra.mxu0 %v113
    %132 = vmatprep.subr.bf16.mxu0 0
    %133 = vmatpush1.bf16.msra.mxu0 %v114
    %134 = vmatprep.subr.bf16.mxu0 0
    %135 = vmatpush1.bf16.msra.mxu0 %v115
    %136 = vmatprep.subr.bf16.mxu0 0
    %137 = vmatpush1.bf16.msra.mxu0 %v116
    %138 = vmatprep.subr.bf16.mxu0 0
    %139 = vmatpush1.bf16.msra.mxu0 %v117
    %140 = vmatprep.subr.bf16.mxu0 0
    %141 = vmatpush1.bf16.msra.mxu0 %v118
    %142 = vmatprep.subr.bf16.mxu0 0
    %143 = vmatpush1.bf16.msra.mxu0 %v119
    %144 = vmatprep.subr.bf16.mxu0 0
    %145 = vmatpush1.bf16.msra.mxu0 0
    %146 = vmatprep.subr.bf16.mxu0 0
    %147 = vmatpush1.bf16.msra.mxu0 0
    %148 = vmatprep.subr.bf16.mxu0 0
    %149 = vmatpush1.bf16.msra.mxu0 0
    %150 = vmatprep.subr.bf16.mxu0 0
    %151 = vmatpush1.bf16.msra.mxu0 0
    %152 = vmatprep.subr.bf16.mxu0 0
    %153 = vmatpush1.bf16.msra.mxu0 0
    %154 = vmatprep.subr.bf16.mxu0 0
    %155 = vmatpush1.bf16.msra.mxu0 0
    %156 = vmatprep.subr.bf16.mxu0 0
    %157 = vmatpush1.bf16.msra.mxu0 0
    %158 = vmatprep.subr.bf16.mxu0 0
    %159 = vmatpush1.bf16.msra.mxu0 0
    %160 = vmatprep.mubr.bf16.mxu0 0
    %161 = vmatmul.mubr.bf16.gmra.mrb[0].mxu0 %v78
    %v162 = vpop.f32.mrb[0].mxu0
    %v163 = vadd.f32 %v72, %v162
    %v164 = vpop.f32.mrb[0].mxu0
    %v165 = vpop.f32.mrb[0].mxu0
    %v166 = vadd.f32 %v72, %v165
    %v167 = vpop.f32.mrb[0].mxu0
    %168 = vdwg.mxu0
    %v169 = vmax.f32 %v163, 0.0
    %v170 = vmax.f32 %v166, 0.0
    %v171 = vpack.c.bf16 %v170, %v169
    %s172 = scalar_lea.vmem [#allocation2], 64
    %v173 = vld [vmem:[%s172] sm:$0xf]
    %v174 = vld [vmem:[%s172 + $0x4] sm:$0xf]
    %v175 = vld [vmem:[%s172 + $0x8] sm:$0xf]
    %v176 = vld [vmem:[%s172 + $0xc] sm:$0xf]
    %v177 = vld [vmem:[%s172 + $0x10] sm:$0xf]
    %v178 = vld [vmem:[%s172 + $0x14] sm:$0xf]
    %v179 = vld [vmem:[%s172 + $0x18] sm:$0xf]
    %v180 = vld [vmem:[%s172 + $0x1c] sm:$0xf]
    %v181 = vld [vmem:[%s172 + $0x20] sm:$0xf]
    %v182 = vld [vmem:[%s172 + $0x24] sm:$0xf]
    %v183 = vld [vmem:[%s172 + $0x28] sm:$0xf]
    %v184 = vld [vmem:[%s172 + $0x2c] sm:$0xf]
    %v185 = vld [vmem:[%s172 + $0x30] sm:$0xf]
    %v186 = vld [vmem:[%s172 + $0x34] sm:$0xf]
    %v187 = vld [vmem:[%s172 + $0x38] sm:$0xf]
    %v188 = vld [vmem:[%s172 + $0x3c] sm:$0xf]
    %s189 = scalar_lea.vmem %s2, 1
    %v190 = vld [vmem:[%s189] sm:$0x1]
    %v192 = vlaneseq
    %v193 = vshrl.u32 %v192, 7
    %v194 = vsub.s32 0, %v193
    %v195 = vrot.slane %v190, %v194
    %v213 = vunpack.c.l.b16 %v173
    %v214 = vunpack.c.l.b16 %v174
    %v215 = vunpack.c.l.b16 %v175
    %v216 = vunpack.c.l.b16 %v176
    %v217 = vunpack.c.l.b16 %v177
    %v218 = vunpack.c.l.b16 %v178
    %v219 = vunpack.c.l.b16 %v179
    %v220 = vunpack.c.l.b16 %v180
    %v221 = vunpack.c.l.b16 %v181
    %v222 = vunpack.c.l.b16 %v182
    %v223 = vunpack.c.l.b16 %v183
    %v224 = vunpack.c.l.b16 %v184
    %v225 = vunpack.c.l.b16 %v185
    %v226 = vunpack.c.l.b16 %v186
    %v227 = vunpack.c.l.b16 %v187
    %v228 = vunpack.c.l.b16 %v188
    %v229 = vpack.c.b16 %v214, %v213
    %v230 = vpack.c.b16 %v216, %v215
    %v231 = vpack.c.b16 %v218, %v217
    %v232 = vpack.c.b16 %v220, %v219
    %v233 = vpack.c.b16 %v222, %v221
    %v234 = vpack.c.b16 %v224, %v223
    %v235 = vpack.c.b16 %v226, %v225
    %v236 = vpack.c.b16 %v228, %v227
    %245 = vmatprep.subr.bf16.mxu0 0
    %246 = vmatpush1.bf16.msra.mxu0 %v229
    %247 = vmatprep.subr.bf16.mxu0 0
    %248 = vmatpush1.bf16.msra.mxu0 %v230
    %249 = vmatprep.subr.bf16.mxu0 0
    %250 = vmatpush1.bf16.msra.mxu0 %v231
    %251 = vmatprep.subr.bf16.mxu0 0
    %252 = vmatpush1.bf16.msra.mxu0 %v232
    %253 = vmatprep.subr.bf16.mxu0 0
    %254 = vmatpush1.bf16.msra.mxu0 %v233
    %255 = vmatprep.subr.bf16.mxu0 0
    %256 = vmatpush1.bf16.msra.mxu0 %v234
    %257 = vmatprep.subr.bf16.mxu0 0
    %258 = vmatpush1.bf16.msra.mxu0 %v235
    %259 = vmatprep.subr.bf16.mxu0 0
    %260 = vmatpush1.bf16.msra.mxu0 %v236
    %261 = vmatprep.subr.bf16.mxu0 0
    %262 = vmatpush1.bf16.msra.mxu0 0
    %263 = vmatprep.subr.bf16.mxu0 0
    %264 = vmatpush1.bf16.msra.mxu0 0
    %265 = vmatprep.subr.bf16.mxu0 0
    %266 = vmatpush1.bf16.msra.mxu0 0
    %267 = vmatprep.subr.bf16.mxu0 0
    %268 = vmatpush1.bf16.msra.mxu0 0
    %269 = vmatprep.subr.bf16.mxu0 0
    %270 = vmatpush1.bf16.msra.mxu0 0
    %271 = vmatprep.subr.bf16.mxu0 0
    %272 = vmatpush1.bf16.msra.mxu0 0
    %273 = vmatprep.subr.bf16.mxu0 0
    %274 = vmatpush1.bf16.msra.mxu0 0
    %275 = vmatprep.subr.bf16.mxu0 0
    %276 = vmatpush1.bf16.msra.mxu0 0
    %277 = vmatprep.mubr.bf16.mxu0 0
    %278 = vmatmul.mubr.bf16.gmra.mrb[0].mxu0 %v171
    %v279 = vpop.f32.mrb[0].mxu0
    %v280 = vadd.f32 %v195, %v279
    %v281 = vpop.f32.mrb[0].mxu0
    %v282 = vpop.f32.mrb[0].mxu0
    %v283 = vadd.f32 %v195, %v282
    %v284 = vpop.f32.mrb[0].mxu0
    %285 = vdwg.mxu0
    %v286 = vmax.f32 %v280, 0.0
    %v287 = vmax.f32 %v283, 0.0
    %v288 = vpack.c.bf16 %v287, %v286
    %v289 = vld [vmem:[#allocation4] sm:$0xf]
    %v290 = vld [vmem:[#allocation4 + $0x4] sm:$0xf]
    %v291 = vld [vmem:[#allocation4 + $0x8] sm:$0xf]
    %v292 = vld [vmem:[#allocation4 + $0xc] sm:$0xf]
    %v293 = vld [vmem:[#allocation4 + $0x10] sm:$0xf]
    %v294 = vld [vmem:[#allocation4 + $0x14] sm:$0xf]
    %v295 = vld [vmem:[#allocation4 + $0x18] sm:$0xf]
    %v296 = vld [vmem:[#allocation4 + $0x1c] sm:$0xf]
    %v297 = vld [vmem:[#allocation4 + $0x20] sm:$0xf]
    %v298 = vld [vmem:[#allocation4 + $0x24] sm:$0xf]
    %v299 = vld [vmem:[#allocation4 + $0x28] sm:$0xf]
    %v300 = vld [vmem:[#allocation4 + $0x2c] sm:$0xf]
    %v301 = vld [vmem:[#allocation4 + $0x30] sm:$0xf]
    %v302 = vld [vmem:[#allocation4 + $0x34] sm:$0xf]
    %v303 = vld [vmem:[#allocation4 + $0x38] sm:$0xf]
    %v304 = vld [vmem:[#allocation4 + $0x3c] sm:$0xf]
    %v305 = vld [vmem:[%s4] sm:$0x1]
    %v307 = vlaneseq
    %v308 = vshrl.u32 %v307, 7
    %v309 = vsub.s32 0, %v308
    %v310 = vrot.slane %v305, %v309
    %v328 = vunpack.c.l.b16 %v289
    %v329 = vunpack.c.l.b16 %v290
    %v330 = vunpack.c.l.b16 %v291
    %v331 = vunpack.c.l.b16 %v292
    %v332 = vunpack.c.l.b16 %v293
    %v333 = vunpack.c.l.b16 %v294
    %v334 = vunpack.c.l.b16 %v295
    %v335 = vunpack.c.l.b16 %v296
    %v336 = vunpack.c.l.b16 %v297
    %v337 = vunpack.c.l.b16 %v298
    %v338 = vunpack.c.l.b16 %v299
    %v339 = vunpack.c.l.b16 %v300
    %v340 = vunpack.c.l.b16 %v301
    %v341 = vunpack.c.l.b16 %v302
    %v342 = vunpack.c.l.b16 %v303
    %v343 = vunpack.c.l.b16 %v304
    %v344 = vpack.c.b16 %v329, %v328
    %v345 = vpack.c.b16 %v331, %v330
    %v346 = vpack.c.b16 %v333, %v332
    %v347 = vpack.c.b16 %v335, %v334
    %v348 = vpack.c.b16 %v337, %v336
    %v349 = vpack.c.b16 %v339, %v338
    %v350 = vpack.c.b16 %v341, %v340
    %v351 = vpack.c.b16 %v343, %v342
    %360 = vmatprep.subr.bf16.mxu0 0
    %361 = vmatpush1.bf16.msra.mxu0 %v344
    %362 = vmatprep.subr.bf16.mxu0 0
    %363 = vmatpush1.bf16.msra.mxu0 %v345
    %364 = vmatprep.subr.bf16.mxu0 0
    %365 = vmatpush1.bf16.msra.mxu0 %v346
    %366 = vmatprep.subr.bf16.mxu0 0
    %367 = vmatpush1.bf16.msra.mxu0 %v347
    %368 = vmatprep.subr.bf16.mxu0 0
    %369 = vmatpush1.bf16.msra.mxu0 %v348
    %370 = vmatprep.subr.bf16.mxu0 0
    %371 = vmatpush1.bf16.msra.mxu0 %v349
    %372 = vmatprep.subr.bf16.mxu0 0
    %373 = vmatpush1.bf16.msra.mxu0 %v350
    %374 = vmatprep.subr.bf16.mxu0 0
    %375 = vmatpush1.bf16.msra.mxu0 %v351
    %376 = vmatprep.subr.bf16.mxu0 0
    %377 = vmatpush1.bf16.msra.mxu0 0
    %378 = vmatprep.subr.bf16.mxu0 0
    %379 = vmatpush1.bf16.msra.mxu0 0
    %380 = vmatprep.subr.bf16.mxu0 0
    %381 = vmatpush1.bf16.msra.mxu0 0
    %382 = vmatprep.subr.bf16.mxu0 0
    %383 = vmatpush1.bf16.msra.mxu0 0
    %384 = vmatprep.subr.bf16.mxu0 0
    %385 = vmatpush1.bf16.msra.mxu0 0
    %386 = vmatprep.subr.bf16.mxu0 0
    %387 = vmatpush1.bf16.msra.mxu0 0
    %388 = vmatprep.subr.bf16.mxu0 0
    %389 = vmatpush1.bf16.msra.mxu0 0
    %390 = vmatprep.subr.bf16.mxu0 0
    %391 = vmatpush1.bf16.msra.mxu0 0
    %392 = vmatprep.mubr.bf16.mxu0 0
    %393 = vmatmul.mubr.bf16.gmra.mrb[0].mxu0 %v288
    %v394 = vpop.f32.mrb[0].mxu0
    %v395 = vadd.f32 %v310, %v394
    %v396 = vpop.f32.mrb[0].mxu0
    %v397 = vpop.f32.mrb[0].mxu0
    %v398 = vadd.f32 %v310, %v397
    %v399 = vpop.f32.mrb[0].mxu0
    %400 = vdwg.mxu0
    %401 = vst [vmem:[%s5] sm:$0xff] %v395
    %402 = vst [vmem:[%s5 + $0x8] sm:$0xff] %v398
    // Predicated region
    $region30: #{_mlp_forward_2d.1} parent=1 // pred_check
      _
    $region31: #{_mlp_forward_2d.1} parent=1 // pred_check_branch
      %404 = sbr.rel (0) target = $region33
    $region32: #{_mlp_forward_2d.1} parent=1 // pred_region
      _
    $region33: #{_mlp_forward_2d.1} parent=1 // pred_fallthru
      _
    // Predicated region
    $region34: #{_mlp_forward_2d.1} parent=1 // pred_check
      _
    $region35: #{_mlp_forward_2d.1} parent=1 // pred_check_branch
      %406 = sbr.rel (0) target = $region37
    $region36: #{_mlp_forward_2d.1} parent=1 // pred_region
      _
    $region37: #{_mlp_forward_2d.1} parent=1 // pred_fallthru
      _
    %407 = vsyncpa [#allocation3], 1
    %408 = vsyncpa [#allocation5], 1

</llo_original>
